<compile_context>
chip_gen: v7x
topology: tpu7x:2x2x1
jax: 0.10.0
libtpu: 0.0.40
codegen_flags: <defaults>
</compile_context>

<pallas_src>
import functools

import numpy as np
import jax
import jax.numpy as jnp
from jax import lax
from jax.experimental import pallas as pl
from jax.experimental.pallas import tpu as pltpu


def _embedding_loss_kernel(c_ref, idxr_ref, idxc_ref, invc_ref, feat_ref,
                           o_ref, csum_ref, hsum_ref,
                           *, delta_var, delta_dist, use_mxu_hsum):
    p = pl.program_id(0)                 # 0: cluster sums, 1: hinge loss
    t = pl.program_id(1)                 # N-tile index
    last_t = pl.num_programs(1) - 1

    tn = feat_ref.shape[0]
    c_pad = invc_ref.shape[0]

    @pl.when(jnp.logical_and(p == 0, t == 0))
    def _init():
        csum_ref[...] = jnp.zeros_like(csum_ref)
        hsum_ref[...] = jnp.zeros_like(hsum_ref)

    @pl.when(p == 0)
    def _accum_cluster_sums():
        # Lane-dense one-hot (C_pad, TN): padded points (idx == -1) give an
        # all-zero column, so garbage padded feature rows never contribute.
        onehot_cn = (lax.broadcasted_iota(jnp.int32, (c_pad, tn), 0)
                     == idxr_ref[...]).astype(jnp.float32)
        feats = feat_ref[...].astype(jnp.float32)      # upcast once per tile
        # Standard (C_pad, TN) @ (TN, F) MXU matmul — no LHS-dim-0 contraction.
        csum_ref[...] += lax.dot_general(
            onehot_cn, feats, (((1,), (0,)), ((), ())),
            preferred_element_type=jnp.float32)

    @pl.when(jnp.logical_and(p == 0, t == last_t))
    def _finalize_means():
        # Scale sums -> means at the END of pass 0 (padded clusters: inv=0).
        csum_ref[...] = csum_ref[...] * invc_ref[...]

    @pl.when(p == 1)
    def _accum_hinge():
        feats = feat_ref[...].astype(jnp.float32)
        onehot_nc = (lax.broadcasted_iota(jnp.int32, (tn, c_pad), 1)
                     == idxc_ref[...]).astype(jnp.float32)
        means = csum_ref[...]                                      # (C_pad, F)
        assigned = jnp.dot(onehot_nc, means,
                           preferred_element_type=jnp.float32)     # (TN, F)
        diff = feats - assigned
        d2 = jnp.sum(diff * diff, axis=1, keepdims=True)           # (TN, 1)
        dist = jnp.sqrt(d2)
        hinge = jnp.maximum(dist - delta_var, 0.0)
        pp = hinge * hinge                                         # (TN, 1)
        if use_mxu_hsum:
            # Large C: per-cluster sum of hinge^2 on the MXU (matvec).
            onehot_cn = (lax.broadcasted_iota(jnp.int32, (c_pad, tn), 0)
                         == idxr_ref[...]).astype(jnp.float32)
            hsum_ref[...] += lax.dot_general(
                onehot_cn, pp, (((1,), (0,)), ((), ())),
                preferred_element_type=jnp.float32)                # (C_pad, 1)
        else:
            # Small C: VPU multiply + sublane reduce.
            hsum_ref[...] += jnp.sum(onehot_nc * pp, axis=0,
                                     keepdims=True)                # (1, C_pad)

    # NOTE: this pl.when is traced after _accum_hinge, so at the final grid
    # step the accumulation above runs before the finalize below.
    @pl.when(jnp.logical_and(p == 1, t == last_t))
    def _finalize_loss():
        c = c_ref[0]                                   # real cluster count
        cf = c.astype(jnp.float32)
        invc = invc_ref[...]                           # (C_pad, 1)

        # ---- variance (pull) loss ----
        if use_mxu_hsum:
            var_total = jnp.sum(hsum_ref[...] * invc)
        else:
            var_total = jnp.sum(hsum_ref[...] * jnp.transpose(invc))
        var_loss = var_total / cf

        # ---- distance (push) loss ----
        means = csum_ref[...]                          # padded rows are zero
        norms = jnp.sum(means * means, axis=1, keepdims=True)
        gram = lax.dot_general(means, means, (((1,), (1,)), ((), ())),
                               preferred_element_type=jnp.float32)
        d2m = jnp.maximum(norms + jnp.transpose(norms) - 2.0 * gram, 0.0)
        dm = jnp.sqrt(d2m)
        hd = jnp.maximum(delta_dist - dm, 0.0)
        ri = lax.broadcasted_iota(jnp.int32, (c_pad, c_pad), 0)
        ci = lax.broadcasted_iota(jnp.int32, (c_pad, c_pad), 1)
        offdiag = jnp.logical_and(jnp.logical_and(ri < c, ci < c),
                                  ri != ci).astype(jnp.float32)
        denom = jnp.maximum(cf * (cf - 1.0), 1.0)
        dist_loss = jnp.where(c > 1, jnp.sum(hd * hd * offdiag) / denom, 0.0)

        o_ref[0, 0] = var_loss + dist_loss


def _next_pow2(n, minimum):
    return max(minimum, 1 << max(0, (int(n) - 1).bit_length()))


@functools.lru_cache(maxsize=None)
def _vmem_limit_bytes():
    cap = 64 * 1024 * 1024                 # conservative default (v7x per-TC)
    try:
        cap = int(pltpu.get_tpu_info().vmem_capacity_bytes)
    except Exception:
        pass
    # Leave headroom for compiler scratch; 48 MiB on 64 MiB parts, 96 MiB on
    # 128 MiB v5e/v6e parts.
    return min((cap * 3) // 4, 96 * 1024 * 1024)


def _pick_tile(n_pad, c_pad, f, feat_bytes, budget_bytes):
    """Largest power-of-two row tile whose working set fits the VMEM budget."""
    def est(tn):
        feat_tiles = 2 * tn * f * feat_bytes         # double-buffered tile
        temps = 2 * tn * f * 4                       # f32 upcast + 'assigned'
        onehots = 2 * tn * c_pad * 4                 # both orientations
        scratch = c_pad * f * 4 + c_pad * 4 + 2 * c_pad * c_pad * 4
        idx = 2 * 2 * tn * 4                         # row+col idx, 2 buffers
        return feat_tiles + temps + onehots + scratch + idx + (2 << 20)

    tn = n_pad
    floor = min(n_pad, 512)                          # keep tiles lane-aligned
    while tn > floor and est(tn) > budget_bytes:
        tn //= 2
    return tn


@functools.lru_cache(maxsize=None)
def _build_call(n_pad, c_pad, f, tn, delta_var, delta_dist, feat_dtype_name,
                vmem_limit_bytes):
    del feat_dtype_name                              # cache-key only
    n_tiles = n_pad // tn
    use_mxu_hsum = c_pad >= 128
    kernel = functools.partial(_embedding_loss_kernel,
                               delta_var=delta_var, delta_dist=delta_dist,
                               use_mxu_hsum=use_mxu_hsum)
    hsum_shape = (c_pad, 1) if use_mxu_hsum else (1, c_pad)
    grid_spec = pltpu.PrefetchScalarGridSpec(
        num_scalar_prefetch=1,                       # real cluster count C
        grid=(2, n_tiles),                           # (pass, N tile)
        in_specs=[
            pl.BlockSpec((1, tn), lambda p, t, c: (0, t)),       # idx, lane-dense
            pl.BlockSpec((tn, 1), lambda p, t, c: (t, 0)),       # idx, sublane
            pl.BlockSpec((c_pad, 1), lambda p, t, c: (0, 0)),    # 1 / counts
            pl.BlockSpec((tn, f), lambda p, t, c: (t, 0)),       # features
        ],
        out_specs=pl.BlockSpec((1, 1), lambda p, t, c: (0, 0),
                               memory_space=pltpu.MemorySpace.SMEM),
        scratch_shapes=[
            pltpu.VMEM((c_pad, f), jnp.float32),     # cluster sums -> means
            pltpu.VMEM(hsum_shape, jnp.float32),     # per-cluster hinge^2
        ],
    )
    call = pl.pallas_call(
        kernel,
        out_shape=jax.ShapeDtypeStruct((1, 1), jnp.float32),
        grid_spec=grid_spec,
        compiler_params=pltpu.CompilerParams(
            dimension_semantics=("arbitrary", "arbitrary"),
            vmem_limit_bytes=int(vmem_limit_bytes)),
    )
    return jax.jit(call)


def embedding_loss(features, labels, delta_var=0.5, delta_dist=10.0,
                   feature_dtype=jnp.bfloat16):
    """features: (N, F) array; labels: numpy (N, 2) rows of [fr, track_id].

    feature_dtype=jnp.float32 reproduces the PyTorch f32 forward exactly;
    the bf16 default halves feature HBM traffic (accumulation stays f32).
    """
    labels = np.asarray(labels)
    tp_idx = np.flatnonzero(labels[:, 1] >= 0)
    if tp_idx.size == 0:
        return jnp.float32(0.0)                      # C == 0 path

    feats = jnp.asarray(features)
    lab = labels[tp_idx]
    cluster_ids = np.unique(lab[:, 1])
    C = int(cluster_ids.shape[0])
    N = int(tp_idx.size)
    F = int(feats.shape[1])

    n_pad = _next_pow2(N, 8)
    c_pad = _next_pow2(C, 8)

    feat_dtype = np.dtype(feature_dtype)
    vmem_limit = _vmem_limit_bytes()
    tn = _pick_tile(n_pad, c_pad, F, feat_dtype.itemsize, int(vmem_limit * 0.6))

    # Per-point cluster index; padded points get -1 (match no cluster).
    idx_col = np.full((n_pad, 1), -1, dtype=np.int32)
    idx_col[:N, 0] = np.searchsorted(cluster_ids, lab[:, 1]).astype(np.int32)
    idx_row = np.ascontiguousarray(idx_col.reshape(1, n_pad))

    counts = np.bincount(idx_col[:N, 0], minlength=C).astype(np.float32)
    inv_counts = np.zeros((c_pad, 1), dtype=np.float32)
    inv_counts[:C, 0] = 1.0 / counts

    # Single gather (no zero-init + scatter). Padded rows reuse a real row:
    # their one-hot column is all-zero so the contents never contribute.
    take_idx = np.full((n_pad,), int(tp_idx[0]), dtype=np.int32)
    take_idx[:N] = tp_idx
    feats_pad = jnp.take(feats, jnp.asarray(take_idx), axis=0).astype(feat_dtype)

    call = _build_call(n_pad, c_pad, F, tn, float(delta_var), float(delta_dist),
                       feat_dtype.name, int(vmem_limit))
    out = call(jnp.asarray([C], dtype=jnp.int32),
               jnp.asarray(idx_row),
               jnp.asarray(idx_col),
               jnp.asarray(inv_counts),
               feats_pad)
    return out[0, 0]


def _reference_numpy(features, labels, delta_var, delta_dist):
    tp = labels[:, 1] >= 0
    f = features[tp]
    lab = labels[tp]
    cids = np.unique(lab[:, 1])
    C = len(cids)
    means = []
    var_loss = 0.0
    for c in cids:
        fc = f[lab[:, 1] == c]
        m = fc.mean(axis=0, keepdims=True)
        means.append(m)
        d = np.linalg.norm(fc - m, axis=1)
        var_loss += np.mean(np.maximum(d - delta_var, 0.0) ** 2)
    if C > 0:
        var_loss /= C
    dist_loss = 0.0
    if C > 1:
        for i in range(C):
            for j in range(C):
                if i == j:
                    continue
                md = np.linalg.norm(means[i] - means[j], axis=1)[0]
                dist_loss += np.maximum(delta_dist - md, 0.0) ** 2
        dist_loss /= C * (C - 1)
    return np.float32(var_loss + dist_loss)


if __name__ == "__main__":
    key = jax.random.PRNGKey(0)
    N, F = 16, 32
    features = jax.random.normal(key, (N, F), dtype=jnp.float32)

    frames = np.arange(N, dtype=np.int64)
    track_ids = np.array([0, 0, 1, 2, -1, 1, 2, 0, -1, 2, 1, 1, 0, 2, -1, 2],
                         dtype=np.int64)
    labels = np.stack([frames, track_ids], axis=1)        # (N, 2)

    ref = _reference_numpy(np.asarray(features), labels, 0.5, 10.0)

    # Exact-semantics path (f32 feature DMA): tight tolerance.
    loss_f32 = jax.block_until_ready(
        embedding_loss(features, labels, 0.5, 10.0, feature_dtype=jnp.float32))
    assert np.allclose(np.asarray(loss_f32), ref, rtol=1e-3, atol=1e-3), (
        loss_f32, ref)

    # Default fast path (bf16 feature DMA, f32 accumulation): looser tolerance.
    loss_bf16 = jax.block_until_ready(
        embedding_loss(features, labels, 0.5, 10.0))
    assert np.allclose(np.asarray(loss_bf16), ref, rtol=2e-2, atol=2e-2), (
        loss_bf16, ref)

    print("KERNEL_OK")
</pallas_src>

<mosaic_0001>
module attributes {stable_mosaic.version = 11 : i64} {
  func.func @_embedding_loss_kernel(%arg0: i32, %arg1: i32, %arg2: memref<1xi32, #tpu.memory_space<smem>>, %arg3: memref<1x16xi32, #tpu.memory_space<vmem>>, %arg4: memref<16x1xi32, #tpu.memory_space<vmem>>, %arg5: memref<8x1xf32, #tpu.memory_space<vmem>>, %arg6: memref<16x32xf32, #tpu.memory_space<vmem>>, %arg7: memref<1x1xf32, #tpu.memory_space<smem>>, %arg8: memref<8x32xf32, #tpu.memory_space<vmem>>, %arg9: memref<1x8xf32, #tpu.memory_space<vmem>>) attributes {dimension_semantics = [#tpu.dimension_semantics<arbitrary>, #tpu.dimension_semantics<arbitrary>], iteration_bounds = array<i64: 2, 1>, scalar_prefetch = 1 : i64, scratch_operands = 2 : i64, tpu.core_type = #tpu.core_type<tc>, window_params = [{transform_indices = @transform_0, window_bounds = array<i64: 1, 16>}, {transform_indices = @transform_1, window_bounds = array<i64: 16, 1>}, {pipeline_mode = #tpu.pipeline_mode<synchronous>, transform_indices = @transform_2, window_bounds = array<i64: 8, 1>}, {transform_indices = @transform_3, window_bounds = array<i64: 16, 32>}, {transform_indices = @transform_4, window_bounds = array<i64: 1, 1>}]} {
    %c0_i32 = arith.constant 0 : i32
    %0 = arith.cmpi eq, %arg0, %c0_i32 : i32
    %c0_i32_0 = arith.constant 0 : i32
    %1 = arith.cmpi eq, %arg1, %c0_i32_0 : i32
    %2 = arith.andi %0, %1 : i1
    %3 = arith.extui %2 : i1 to i32
    %c0_i32_1 = arith.constant 0 : i32
    %4 = arith.cmpi ne, %3, %c0_i32_1 : i32
    scf.if %4 {
      %cst = arith.constant 0.000000e+00 : f32
      %21 = vector.broadcast %cst : f32 to vector<8x32xf32>
      %c0 = arith.constant 0 : index
      %c0_11 = arith.constant 0 : index
      %22 = vector.load %arg8[%c0, %c0_11] : memref<8x32xf32, #tpu.memory_space<vmem>>, vector<8x32xf32>
      tpu.vector_store %arg8[%c0, %c0_11], %21 {strides = array<i32>} : memref<8x32xf32, #tpu.memory_space<vmem>>, vector<8x32xf32>,
      %cst_12 = arith.constant 0.000000e+00 : f32
      %23 = vector.broadcast %cst_12 : f32 to vector<1x8xf32>
      %c0_13 = arith.constant 0 : index
      %c0_14 = arith.constant 0 : index
      %24 = vector.load %arg9[%c0_13, %c0_14] : memref<1x8xf32, #tpu.memory_space<vmem>>, vector<1x8xf32>
      tpu.vector_store %arg9[%c0_13, %c0_14], %23 {strides = array<i32>} : memref<1x8xf32, #tpu.memory_space<vmem>>, vector<1x8xf32>,
    } else {
    }
    %c0_i32_2 = arith.constant 0 : i32
    %5 = arith.cmpi eq, %arg0, %c0_i32_2 : i32
    %6 = arith.extui %5 : i1 to i32
    %c0_i32_3 = arith.constant 0 : i32
    %7 = arith.cmpi ne, %6, %c0_i32_3 : i32
    scf.if %7 {
      %21 = tpu.iota {dimensions = array<i32: 0>} : vector<8x16xi32>
      %c0 = arith.constant 0 : index
      %c0_11 = arith.constant 0 : index
      %22 = vector.load %arg3[%c0, %c0_11] : memref<1x16xi32, #tpu.memory_space<vmem>>, vector<1x16xi32>
      %23 = vector.broadcast %22 : vector<1x16xi32> to vector<8x16xi32>
      %24 = arith.cmpi eq, %21, %23 : vector<8x16xi32>
      %25 = arith.extui %24 : vector<8x16xi1> to vector<8x16xi32>
      %26 = arith.sitofp %25 : vector<8x16xi32> to vector<8x16xf32>
      %c0_12 = arith.constant 0 : index
      %c0_13 = arith.constant 0 : index
      %27 = vector.load %arg6[%c0_12, %c0_13] : memref<16x32xf32, #tpu.memory_space<vmem>>, vector<16x32xf32>
      %c0_14 = arith.constant 0 : index
      %c0_15 = arith.constant 0 : index
      %28 = vector.load %arg8[%c0_14, %c0_15] : memref<8x32xf32, #tpu.memory_space<vmem>>, vector<8x32xf32>
      %cst = arith.constant dense<0.000000e+00> : vector<8x32xf32>
      %29 = tpu.matmul %26, %27, %cst {dimension_numbers = #tpu.dot_dimension_numbers<[1], [0], [0], [1], [0, 0, 1, 1], [], []>} : vector<8x16xf32>, vector<16x32xf32>, vector<8x32xf32> -> vector<8x32xf32>
      %30 = arith.addf %28, %29 : vector<8x32xf32>
      %c0_16 = arith.constant 0 : index
      %c0_17 = arith.constant 0 : index
      %31 = vector.load %arg8[%c0_16, %c0_17] : memref<8x32xf32, #tpu.memory_space<vmem>>, vector<8x32xf32>
      tpu.vector_store %arg8[%c0_16, %c0_17], %30 {strides = array<i32>} : memref<8x32xf32, #tpu.memory_space<vmem>>, vector<8x32xf32>,
    } else {
    }
    %c0_i32_4 = arith.constant 0 : i32
    %8 = arith.cmpi eq, %arg0, %c0_i32_4 : i32
    %c0_i32_5 = arith.constant 0 : i32
    %9 = arith.cmpi eq, %arg1, %c0_i32_5 : i32
    %10 = arith.andi %8, %9 : i1
    %11 = arith.extui %10 : i1 to i32
    %c0_i32_6 = arith.constant 0 : i32
    %12 = arith.cmpi ne, %11, %c0_i32_6 : i32
    scf.if %12 {
      %c0 = arith.constant 0 : index
      %c0_11 = arith.constant 0 : index
      %21 = vector.load %arg8[%c0, %c0_11] : memref<8x32xf32, #tpu.memory_space<vmem>>, vector<8x32xf32>
      %c0_12 = arith.constant 0 : index
      %c0_13 = arith.constant 0 : index
      %22 = vector.load %arg5[%c0_12, %c0_13] : memref<8x1xf32, #tpu.memory_space<vmem>>, vector<8x1xf32>
      %23 = vector.broadcast %22 : vector<8x1xf32> to vector<8x32xf32>
      %24 = arith.mulf %21, %23 : vector<8x32xf32>
      %c0_14 = arith.constant 0 : index
      %c0_15 = arith.constant 0 : index
      %25 = vector.load %arg8[%c0_14, %c0_15] : memref<8x32xf32, #tpu.memory_space<vmem>>, vector<8x32xf32>
      tpu.vector_store %arg8[%c0_14, %c0_15], %24 {strides = array<i32>} : memref<8x32xf32, #tpu.memory_space<vmem>>, vector<8x32xf32>,
    } else {
    }
    %c1_i32 = arith.constant 1 : i32
    %13 = arith.cmpi eq, %arg0, %c1_i32 : i32
    %14 = arith.extui %13 : i1 to i32
    %c0_i32_7 = arith.constant 0 : i32
    %15 = arith.cmpi ne, %14, %c0_i32_7 : i32
    scf.if %15 {
      %c0 = arith.constant 0 : index
      %c0_11 = arith.constant 0 : index
      %21 = vector.load %arg6[%c0, %c0_11] : memref<16x32xf32, #tpu.memory_space<vmem>>, vector<16x32xf32>
      %22 = tpu.iota {dimensions = array<i32: 1>} : vector<16x8xi32>
      %c0_12 = arith.constant 0 : index
      %c0_13 = arith.constant 0 : index
      %23 = vector.load %arg4[%c0_12, %c0_13] : memref<16x1xi32, #tpu.memory_space<vmem>>, vector<16x1xi32>
      %24 = vector.broadcast %23 : vector<16x1xi32> to vector<16x8xi32>
      %25 = arith.cmpi eq, %22, %24 : vector<16x8xi32>
      %26 = arith.extui %25 : vector<16x8xi1> to vector<16x8xi32>
      %27 = arith.sitofp %26 : vector<16x8xi32> to vector<16x8xf32>
      %c0_14 = arith.constant 0 : index
      %c0_15 = arith.constant 0 : index
      %28 = vector.load %arg8[%c0_14, %c0_15] : memref<8x32xf32, #tpu.memory_space<vmem>>, vector<8x32xf32>
      %cst = arith.constant dense<0.000000e+00> : vector<16x32xf32>
      %29 = tpu.matmul %27, %28, %cst {dimension_numbers = #tpu.dot_dimension_numbers<[1], [0], [0], [1], [0, 0, 1, 1], [], []>} : vector<16x8xf32>, vector<8x32xf32>, vector<16x32xf32> -> vector<16x32xf32>
      %30 = arith.subf %21, %29 : vector<16x32xf32>
      %31 = arith.mulf %30, %30 : vector<16x32xf32>
      %cst_16 = arith.constant dense<0.000000e+00> : vector<16xf32>
      %32 = vector.multi_reduction <add>, %31, %cst_16 [1] : vector<16x32xf32> to vector<16xf32>
      %33 = vector.shape_cast %32 : vector<16xf32> to vector<16x1xf32>
      %34 = math.sqrt %33 : vector<16x1xf32>
      %cst_17 = arith.constant 5.000000e-01 : f32
      %35 = vector.broadcast %cst_17 : f32 to vector<16x1xf32>
      %36 = arith.subf %34, %35 : vector<16x1xf32>
      %cst_18 = arith.constant 0.000000e+00 : f32
      %37 = vector.broadcast %cst_18 : f32 to vector<16x1xf32>
      %38 = arith.maximumf %36, %37 : vector<16x1xf32>
      %39 = arith.mulf %38, %38 : vector<16x1xf32>
      %c0_19 = arith.constant 0 : index
      %c0_20 = arith.constant 0 : index
      %40 = vector.load %arg9[%c0_19, %c0_20] : memref<1x8xf32, #tpu.memory_space<vmem>>, vector<1x8xf32>
      %41 = vector.broadcast %39 : vector<16x1xf32> to vector<16x8xf32>
      %42 = arith.mulf %27, %41 : vector<16x8xf32>
      %cst_21 = arith.constant dense<0.000000e+00> : vector<8xf32>
      %43 = vector.multi_reduction <add>, %42, %cst_21 [0] : vector<16x8xf32> to vector<8xf32>
      %44 = vector.shape_cast %43 : vector<8xf32> to vector<1x8xf32>
      %45 = arith.addf %40, %44 : vector<1x8xf32>
      %c0_22 = arith.constant 0 : index
      %c0_23 = arith.constant 0 : index
      %46 = vector.load %arg9[%c0_22, %c0_23] : memref<1x8xf32, #tpu.memory_space<vmem>>, vector<1x8xf32>
      tpu.vector_store %arg9[%c0_22, %c0_23], %45 {strides = array<i32>} : memref<1x8xf32, #tpu.memory_space<vmem>>, vector<1x8xf32>,
    } else {
    }
    %c1_i32_8 = arith.constant 1 : i32
    %16 = arith.cmpi eq, %arg0, %c1_i32_8 : i32
    %c0_i32_9 = arith.constant 0 : i32
    %17 = arith.cmpi eq, %arg1, %c0_i32_9 : i32
    %18 = arith.andi %16, %17 : i1
    %19 = arith.extui %18 : i1 to i32
    %c0_i32_10 = arith.constant 0 : i32
    %20 = arith.cmpi ne, %19, %c0_i32_10 : i32
    scf.if %20 {
      %c0 = arith.constant 0 : index
      %21 = memref.load %arg2[%c0] : memref<1xi32, #tpu.memory_space<smem>>
      %22 = arith.sitofp %21 : i32 to f32
      %c0_11 = arith.constant 0 : index
      %c0_12 = arith.constant 0 : index
      %23 = vector.load %arg5[%c0_11, %c0_12] : memref<8x1xf32, #tpu.memory_space<vmem>>, vector<8x1xf32>
      %c0_13 = arith.constant 0 : index
      %c0_14 = arith.constant 0 : index
      %24 = vector.load %arg9[%c0_13, %c0_14] : memref<1x8xf32, #tpu.memory_space<vmem>>, vector<1x8xf32>
      %25 = tpu.transpose %23, [1, 0] : vector<8x1xf32> -> vector<1x8xf32>
      %26 = arith.mulf %24, %25 : vector<1x8xf32>
      %27 = vector.shape_cast %26 : vector<1x8xf32> to vector<1x1x8xf32>
      %cst = arith.constant dense<0.000000e+00> : vector<1xf32>
      %28 = vector.multi_reduction <add>, %27, %cst [1, 2] : vector<1x1x8xf32> to vector<1xf32>
      %29 = vector.shape_cast %28 : vector<1xf32> to vector<1x1x1xf32>
      %30 = vector.extract %29[0, 0, 0] : f32 from vector<1x1x1xf32>
      %31 = arith.divf %30, %22 : f32
      %c0_15 = arith.constant 0 : index
      %c0_16 = arith.constant 0 : index
      %32 = vector.load %arg8[%c0_15, %c0_16] : memref<8x32xf32, #tpu.memory_space<vmem>>, vector<8x32xf32>
      %33 = arith.mulf %32, %32 : vector<8x32xf32>
      %cst_17 = arith.constant dense<0.000000e+00> : vector<8xf32>
      %34 = vector.multi_reduction <add>, %33, %cst_17 [1] : vector<8x32xf32> to vector<8xf32>
      %35 = vector.shape_cast %34 : vector<8xf32> to vector<8x1xf32>
      %cst_18 = arith.constant dense<0.000000e+00> : vector<8x8xf32>
      %36 = tpu.matmul %32, %32, %cst_18 {dimension_numbers = #tpu.dot_dimension_numbers<[1], [1], [0], [0], [0, 0, 1, 0], [], []>} : vector<8x32xf32>, vector<8x32xf32>, vector<8x8xf32> -> vector<8x8xf32>
      %37 = tpu.transpose %35, [1, 0] : vector<8x1xf32> -> vector<1x8xf32>
      %38 = vector.broadcast %35 : vector<8x1xf32> to vector<8x8xf32>
      %39 = vector.broadcast %37 : vector<1x8xf32> to vector<8x8xf32>
      %40 = arith.addf %38, %39 : vector<8x8xf32>
      %cst_19 = arith.constant 2.000000e+00 : f32
      %41 = vector.broadcast %cst_19 : f32 to vector<8x8xf32>
      %42 = arith.mulf %41, %36 : vector<8x8xf32>
      %43 = arith.subf %40, %42 : vector<8x8xf32>
      %cst_20 = arith.constant 0.000000e+00 : f32
      %44 = vector.broadcast %cst_20 : f32 to vector<8x8xf32>
      %45 = arith.maximumf %43, %44 : vector<8x8xf32>
      %46 = math.sqrt %45 : vector<8x8xf32>
      %cst_21 = arith.constant 1.000000e+01 : f32
      %47 = vector.broadcast %cst_21 : f32 to vector<8x8xf32>
      %48 = arith.subf %47, %46 : vector<8x8xf32>
      %cst_22 = arith.constant 0.000000e+00 : f32
      %49 = vector.broadcast %cst_22 : f32 to vector<8x8xf32>
      %50 = arith.maximumf %48, %49 : vector<8x8xf32>
      %51 = tpu.iota {dimensions = array<i32: 0>} : vector<8x8xi32>
      %52 = tpu.iota {dimensions = array<i32: 1>} : vector<8x8xi32>
      %53 = vector.broadcast %21 : i32 to vector<8x8xi32>
      %54 = arith.cmpi slt, %51, %53 : vector<8x8xi32>
      %55 = vector.broadcast %21 : i32 to vector<8x8xi32>
      %56 = arith.cmpi slt, %52, %55 : vector<8x8xi32>
      %57 = arith.andi %54, %56 : vector<8x8xi1>
      %58 = arith.cmpi ne, %51, %52 : vector<8x8xi32>
      %59 = arith.andi %57, %58 : vector<8x8xi1>
      %60 = arith.extui %59 : vector<8x8xi1> to vector<8x8xi32>
      %61 = arith.sitofp %60 : vector<8x8xi32> to vector<8x8xf32>
      %cst_23 = arith.constant 1.000000e+00 : f32
      %62 = arith.subf %22, %cst_23 : f32
      %63 = arith.mulf %22, %62 : f32
      %cst_24 = arith.constant 1.000000e+00 : f32
      %64 = arith.maximumf %63, %cst_24 : f32
      %c1_i32_25 = arith.constant 1 : i32
      %65 = arith.cmpi sgt, %21, %c1_i32_25 : i32
      %66 = arith.mulf %50, %50 : vector<8x8xf32>
      %67 = arith.mulf %66, %61 : vector<8x8xf32>
      %68 = vector.shape_cast %67 : vector<8x8xf32> to vector<1x8x8xf32>
      %cst_26 = arith.constant dense<0.000000e+00> : vector<1xf32>
      %69 = vector.multi_reduction <add>, %68, %cst_26 [1, 2] : vector<1x8x8xf32> to vector<1xf32>
      %70 = vector.shape_cast %69 : vector<1xf32> to vector<1x1x1xf32>
      %71 = vector.extract %70[0, 0, 0] : f32 from vector<1x1x1xf32>
      %72 = arith.divf %71, %64 : f32
      %cst_27 = arith.constant 0.000000e+00 : f32
      %73 = arith.select %65, %72, %cst_27 : f32
      %74 = arith.addf %31, %73 : f32
      %c0_28 = arith.constant 0 : index
      %c0_29 = arith.constant 0 : index
      %75 = memref.load %arg7[%c0_28, %c0_29] : memref<1x1xf32, #tpu.memory_space<smem>>
      memref.store %74, %arg7[%c0_28, %c0_29] : memref<1x1xf32, #tpu.memory_space<smem>>
    } else {
    }
    return
  }
  func.func @transform_0(%arg0: i32, %arg1: i32, %arg2: memref<1xi32, #tpu.memory_space<smem>>) -> (i32, i32) {
    %c0_i32 = arith.constant 0 : i32
    %c0_i32_0 = arith.constant 0 : i32
    return %c0_i32, %arg1 : i32, i32
  }
  func.func @transform_1(%arg0: i32, %arg1: i32, %arg2: memref<1xi32, #tpu.memory_space<smem>>) -> (i32, i32) {
    %c0_i32 = arith.constant 0 : i32
    %c0_i32_0 = arith.constant 0 : i32
    return %arg1, %c0_i32 : i32, i32
  }
  func.func @transform_2(%arg0: i32, %arg1: i32, %arg2: memref<1xi32, #tpu.memory_space<smem>>) -> (i32, i32) {
    %c0_i32 = arith.constant 0 : i32
    %c0_i32_0 = arith.constant 0 : i32
    %c0_i32_1 = arith.constant 0 : i32
    return %c0_i32, %c0_i32_0 : i32, i32
  }
  func.func @transform_3(%arg0: i32, %arg1: i32, %arg2: memref<1xi32, #tpu.memory_space<smem>>) -> (i32, i32) {
    %c0_i32 = arith.constant 0 : i32
    %c0_i32_0 = arith.constant 0 : i32
    return %arg1, %c0_i32 : i32, i32
  }
  func.func @transform_4(%arg0: i32, %arg1: i32, %arg2: memref<1xi32, #tpu.memory_space<smem>>) -> (i32, i32) {
    %c0_i32 = arith.constant 0 : i32
    %c0_i32_0 = arith.constant 0 : i32
    %c0_i32_1 = arith.constant 0 : i32
    return %c0_i32, %c0_i32_0 : i32, i32
  }
}

</mosaic_0001>

<llo_original>
// kernel: tpu_custom_call.1
$region0: #{tpu_custom_call.1}
  #allocation0 [shape = 'u32[]', space=smem, size = 0x4, offset = 0x4, fixed_abs, tag = 'smem constant byte address 0x4 - core index']
  #allocation1 [shape = 'u32[144,128]{1,0:T(1,128)}', space=vmem, size = 0x12000, scoped, tag = 'internal scratch']
  #allocation2 [shape = 'f32[8,32]{1,0:T(8,128)}', space=vmem, size = 0x1000, scoped, tag = 'scratch operand']
  #allocation3 [shape = 'f32[1,8]{1,0:T(1,128)}', space=vmem, size = 0x200, scoped, tag = 'scratch operand']
  #allocation4 [shape = 's32[1]{0}', space=sflag, size = 0x4, scoped, tag = 'scoped memory for tpu_custom_call.1']
  #allocation5 [shape = 's32[1]{0:T(128)S(6)}', space=smem, size = 0x200, scoped, tag = 'prefetched SMEM operand 0']
  %s0 = inlined_call_operand.<no memory space> [shape: s32[1], index: 0, kind: input, shape index: {}]
  %s1 = inlined_call_operand.vmem [shape: s32[1,16], index: 1, kind: input, shape index: {}]
  %s2 = inlined_call_operand.vmem [shape: s32[16,1], index: 2, kind: input, shape index: {}]
  %s3 = inlined_call_operand.vmem [shape: f32[8,1], index: 3, kind: input, shape index: {}]
  %s4 = inlined_call_operand.vmem [shape: f32[16,32], index: 4, kind: input, shape index: {}]
  %s5 = inlined_call_operand.hbm [shape: f32[1,1], index: 5, kind: output, shape index: {}]
  %s6 = sld [smem:[#allocation0]]
  $region69: #{tpu_custom_call.1} parent=0
    _
  %s8 = ssub.s32 1, %s6
  %s9 = scalar_select 0, %s8, %s6
  %10 = sst [smem:[#allocation5]] %s0
  $region1: #{tpu_custom_call.1} parent=0
    #allocation6 [shape = 'u8[512]{0}', space=smem, size = 0x200, scoped, tag = 'output window, operand 0, single buffered']
    #allocation7 [shape = 's32[2]{0}', space=sflag, size = 0x8, scoped, tag = 'scoped memory for tpu_custom_call.1']
    %11 = vsyncpa [#allocation7], 0
    loop: start=0, step=1, limit=4
    $region2: #{tpu_custom_call.1} parent=1 // loop_pre_header
      _
    $region3: #{tpu_custom_call.1} parent=1 // loop_header
      %s13 = sphi 0, %s17
      %p14 = scmp.ge.s32.totalorder %s13, 4
      %s20 = sphi 0, %s32
      %s21 = sphi 0, %s28
      %s22 = sphi 0, %s20
      %s23 = sphi 0, %s21
      %s24 = sphi 0, %s22
      %s25 = sphi 0, %s23
      %s35 = sphi 0, %s37
      %s38 = sphi 0, %s35
      %s39 = sphi 0, %s38
      %s55 = sphi 0, %s39
      %s61 = sphi 0, %s63
      %s64 = sphi 0, %s61
      %s65 = sphi 0, %s64
      %s81 = sphi 0, %s65
      %s85 = sphi 0, %s85
      %s87 = sphi 0, %s85
      %s88 = sphi 0, %s87
      %s102 = sphi 0, %s88
      %s108 = sphi 0, %s110
      %s111 = sphi 0, %s108
      %s112 = sphi 0, %s111
      %s128 = sphi 0, %s112
      %s132 = sphi 0, %s132
      %s134 = sphi 0, %s132
      %s135 = sphi 0, %s134
      %s149 = sphi 0, %s135
    $region4: #{tpu_custom_call.1} parent=1 // loop_header_branch
      %16 = sbr.rel (%p14) target = $region8
    $region5: #{tpu_custom_call.1} parent=1 // loop_body
      %s18 = ssub.s32 %s13, 1
      %s19 = ssub.s32 %s13, 2
      %s26 = sadd.s32 1, %s21
      %p27 = scmp.ge.s32.totalorder %s26, 1
      %s28 = scalar_select %p27, 0, %s26
      %s29 = sadd.s32 1, %s20
      %s30 = scalar_select %p27, %s29, %s20
      %p31 = scmp.ge.s32.totalorder %s30, 2
      %s32 = scalar_select %p31, 0, %s30
      %s33 = ssub.s32 %s21, %s28
      %p34 = scmp.eq.s32.totalorder %s33, 0
      %s36 = sadd.s32 %s35, 1
      %s37 = scalar_select %p34, %s35, %s36
      %p40 = pneg %p34
      %p41 = scmp.eq.s32.totalorder %s13, 1
      %p42 = por %p40, %p41
      %p43 = scmp.ne.s32.totalorder %s35, %s38
      %p44 = scmp.eq.s32.totalorder %s13, 0
      %p45 = por %p43, %p44
      %p46 = scmp.ne.s32.totalorder %s35, %s38
      %p47 = scmp.eq.s32.totalorder %s18, 1
      %p48 = por %p46, %p47
      %p49 = scmp.ne.s32.totalorder %s38, %s39
      %p50 = scmp.eq.s32.totalorder %s18, 0
      %p51 = por %p49, %p50
      %p52 = scmp.ne.s32.totalorder %s38, %s39
      %p53 = scmp.eq.s32.totalorder %s19, 1
      %p54 = por %p52, %p53
      %p56 = scmp.ne.s32.totalorder %s39, %s55
      %p57 = scmp.eq.s32.totalorder %s19, 0
      %p58 = por %p56, %p57
      %s59 = ssub.s32 %s21, %s28
      %p60 = scmp.eq.s32.totalorder %s59, 0
      %s62 = sadd.s32 %s61, 1
      %s63 = scalar_select %p60, %s61, %s62
      %p66 = pneg %p60
      %p67 = scmp.eq.s32.totalorder %s13, 1
      %p68 = por %p66, %p67
      %p69 = scmp.ne.s32.totalorder %s61, %s64
      %p70 = scmp.eq.s32.totalorder %s13, 0
      %p71 = por %p69, %p70
      %p72 = scmp.ne.s32.totalorder %s61, %s64
      %p73 = scmp.eq.s32.totalorder %s18, 1
      %p74 = por %p72, %p73
      %p75 = scmp.ne.s32.totalorder %s64, %s65
      %p76 = scmp.eq.s32.totalorder %s18, 0
      %p77 = por %p75, %p76
      %p78 = scmp.ne.s32.totalorder %s64, %s65
      %p79 = scmp.eq.s32.totalorder %s19, 1
      %p80 = por %p78, %p79
      %p82 = scmp.ne.s32.totalorder %s65, %s81
      %p83 = scmp.eq.s32.totalorder %s19, 0
      %p84 = por %p82, %p83
      %s86 = sadd.s32 %s85, 1
      %p89 = scmp.eq.s32.totalorder %s13, 1
      %p90 = scmp.ne.s32.totalorder %s85, %s87
      %p91 = scmp.eq.s32.totalorder %s13, 0
      %p92 = por %p90, %p91
      %p93 = scmp.ne.s32.totalorder %s85, %s87
      %p94 = scmp.eq.s32.totalorder %s18, 1
      %p95 = por %p93, %p94
      %p96 = scmp.ne.s32.totalorder %s87, %s88
      %p97 = scmp.eq.s32.totalorder %s18, 0
      %p98 = por %p96, %p97
      %p99 = scmp.ne.s32.totalorder %s87, %s88
      %p100 = scmp.eq.s32.totalorder %s19, 1
      %p101 = por %p99, %p100
      %p103 = scmp.ne.s32.totalorder %s88, %s102
      %p104 = scmp.eq.s32.totalorder %s19, 0
      %p105 = por %p103, %p104
      %s106 = ssub.s32 %s21, %s28
      %p107 = scmp.eq.s32.totalorder %s106, 0
      %s109 = sadd.s32 %s108, 1
      %s110 = scalar_select %p107, %s108, %s109
      %p113 = pneg %p107
      %p114 = scmp.eq.s32.totalorder %s13, 1
      %p115 = por %p113, %p114
      %p116 = scmp.ne.s32.totalorder %s108, %s111
      %p117 = scmp.eq.s32.totalorder %s13, 0
      %p118 = por %p116, %p117
      %p119 = scmp.ne.s32.totalorder %s108, %s111
      %p120 = scmp.eq.s32.totalorder %s18, 1
      %p121 = por %p119, %p120
      %p122 = scmp.ne.s32.totalorder %s111, %s112
      %p123 = scmp.eq.s32.totalorder %s18, 0
      %p124 = por %p122, %p123
      %p125 = scmp.ne.s32.totalorder %s111, %s112
      %p126 = scmp.eq.s32.totalorder %s19, 1
      %p127 = por %p125, %p126
      %p129 = scmp.ne.s32.totalorder %s112, %s128
      %p130 = scmp.eq.s32.totalorder %s19, 0
      %p131 = por %p129, %p130
      %s133 = sadd.s32 %s132, 1
      %p136 = scmp.eq.s32.totalorder %s13, 1
      %p137 = scmp.ne.s32.totalorder %s132, %s134
      %p138 = scmp.eq.s32.totalorder %s13, 0
      %p139 = por %p137, %p138
      %p140 = scmp.ne.s32.totalorder %s132, %s134
      %p141 = scmp.eq.s32.totalorder %s18, 1
      %p142 = por %p140, %p141
      %p143 = scmp.ne.s32.totalorder %s134, %s135
      %p144 = scmp.eq.s32.totalorder %s18, 0
      %p145 = por %p143, %p144
      %p146 = scmp.ne.s32.totalorder %s134, %s135
      %p147 = scmp.eq.s32.totalorder %s19, 1
      %p148 = por %p146, %p147
      %p150 = scmp.ne.s32.totalorder %s135, %s149
      %p151 = scmp.eq.s32.totalorder %s19, 0
      %p152 = por %p150, %p151
      %p153 = scmp.le.s32.totalorder 1, %s13
      %p154 = scmp.lt.s32.totalorder %s13, 3
      %p155 = pnand %p153, %p154
      %p156 = pneg %p155
      // Predicated region
      $region9: #{tpu_custom_call.1} parent=5 // pred_check
        _
      $region10: #{tpu_custom_call.1} parent=5 // pred_check_branch
        %158 = sbr.rel (%p155) target = $region12
      $region11: #{tpu_custom_call.1} parent=5 // pred_region
        %s159 = ssub.s32 %s13, 1
        // Predicated region
        $region13: #{tpu_custom_call.1} parent=11 // pred_check
          %p160 = pneg %p51
        $region14: #{tpu_custom_call.1} parent=11 // pred_check_branch
          %162 = sbr.rel (%p160) target = $region16
        $region15: #{tpu_custom_call.1} parent=11 // pred_region
          %p163 = scmp.lt.s32.totalorder %s23, 0
          %s164 = scalar_select %p163, %s23, 0
          %s165 = scalar_lea.vmem %s1, %s164
        $region16: #{tpu_custom_call.1} parent=11 // pred_fallthru
          _
        // Predicated region
        $region17: #{tpu_custom_call.1} parent=11 // pred_check
          %p166 = pneg %p77
        $region18: #{tpu_custom_call.1} parent=11 // pred_check_branch
          %168 = sbr.rel (%p166) target = $region20
        $region19: #{tpu_custom_call.1} parent=11 // pred_region
          %s169 = smul.u32 2, %s23
          %p170 = scmp.lt.s32.totalorder %s169, 1
          %s171 = scalar_select %p170, %s169, 1
          %s172 = smul.addr %s171, 8
          %s173 = scalar_lea.vmem %s2, %s172
          %s174 = smul.u32 2, %s23
        $region20: #{tpu_custom_call.1} parent=11 // pred_fallthru
          _
        // Predicated region
        $region21: #{tpu_custom_call.1} parent=11 // pred_check
          %p175 = pneg %p98
        $region22: #{tpu_custom_call.1} parent=11 // pred_check_branch
          %177 = sbr.rel (%p175) target = $region24
        $region23: #{tpu_custom_call.1} parent=11 // pred_region
          _
        $region24: #{tpu_custom_call.1} parent=11 // pred_fallthru
          _
        // Predicated region
        $region25: #{tpu_custom_call.1} parent=11 // pred_check
          %p178 = pneg %p124
        $region26: #{tpu_custom_call.1} parent=11 // pred_check_branch
          %180 = sbr.rel (%p178) target = $region28
        $region27: #{tpu_custom_call.1} parent=11 // pred_region
          %s181 = smul.u32 2, %s23
          %p182 = scmp.lt.s32.totalorder %s181, 1
          %s183 = scalar_select %p182, %s181, 1
          %s184 = smul.addr %s183, 8
          %s185 = scalar_lea.vmem %s4, %s184
          %s186 = smul.u32 2, %s23
        $region28: #{tpu_custom_call.1} parent=11 // pred_fallthru
          _
      $region12: #{tpu_custom_call.1} parent=5 // pred_fallthru
        _
      %p187 = scmp.lt.s32.totalorder %s13, 2
      // Predicated region
      $region29: #{tpu_custom_call.1} parent=5 // pred_check
        %p188 = pneg %p187
      $region30: #{tpu_custom_call.1} parent=5 // pred_check_branch
        %190 = sbr.rel (%p188) target = $region32
      $region31: #{tpu_custom_call.1} parent=5 // pred_region
        _
      $region32: #{tpu_custom_call.1} parent=5 // pred_fallthru
        _
      %p191 = scmp.le.s32.totalorder 1, %s13
      %p192 = scmp.lt.s32.totalorder %s13, 3
      %p193 = pnand %p191, %p192
      %p194 = pneg %p193
      // Predicated region
      $region33: #{tpu_custom_call.1} parent=5 // pred_check
        _
      $region34: #{tpu_custom_call.1} parent=5 // pred_check_branch
        %196 = sbr.rel (%p193) target = $region36
      $region35: #{tpu_custom_call.1} parent=5 // pred_region
        %s197 = ssub.s32 %s13, 1
        %p198 = scmp.lt.s32.totalorder %s23, 0
        %s199 = scalar_select %p198, %s23, 0
        %s200 = scalar_lea.vmem %s1, %s199
        %p201 = pneg %p51
        %p202 = pneg %p48
        %s203 = smul.u32 2, %s23
        %p204 = scmp.lt.s32.totalorder %s203, 1
        %s205 = scalar_select %p204, %s203, 1
        %s206 = smul.addr %s205, 8
        %s207 = scalar_lea.vmem %s2, %s206
        %p208 = pneg %p77
        %p209 = pneg %p74
        %p210 = pneg %p98
        %p211 = pneg %p95
        %s212 = smul.u32 2, %s23
        %p213 = scmp.lt.s32.totalorder %s212, 1
        %s214 = scalar_select %p213, %s212, 1
        %s215 = smul.addr %s214, 8
        %s216 = scalar_lea.vmem %s4, %s215
        %p217 = pneg %p124
        %p218 = pneg %p121
        %p219 = pneg %p145
        %p220 = pneg %p142
        %p221 = scmp.lt.s32.totalorder %s23, 0
        %s222 = scalar_select %p221, %s23, 0
        %s223 = scalar_lea.vmem %s1, %s222
        %s224 = smul.u32 2, %s23
        %p225 = scmp.lt.s32.totalorder %s224, 1
        %s226 = scalar_select %p225, %s224, 1
        %s227 = smul.addr %s226, 8
        %s228 = scalar_lea.vmem %s2, %s227
        %s229 = smul.u32 2, %s23
        %s230 = smul.u32 2, %s23
        %p231 = scmp.lt.s32.totalorder %s230, 1
        %s232 = scalar_select %p231, %s230, 1
        %s233 = smul.addr %s232, 8
        %s234 = scalar_lea.vmem %s4, %s233
        %s235 = smul.u32 2, %s23
        %p236 = scmp.eq.s32.totalorder %s22, 0
        %p237 = scmp.eq.s32.totalorder %s23, 0
        %p238 = pnand %p236, %p237
        %p239 = pneg %p238
        // Predicated region
        $region37: #{tpu_custom_call.1} parent=35 // pred_check
          _
        $region38: #{tpu_custom_call.1} parent=35 // pred_check_branch
          %241 = sbr.rel (%p238) target = $region40
        $region39: #{tpu_custom_call.1} parent=35 // pred_region
          %vm242 = vcmask 261120
          %243 = vst.msk [vmem:[#allocation2] sm:$0xff] %vm242, 0.0
          %vm244 = vcmask 57344
          %245 = vst.msk [vmem:[#allocation3] sm:$0x1] %vm244, 0.0
        $region40: #{tpu_custom_call.1} parent=35 // pred_fallthru
          _
        // Predicated region
        $region41: #{tpu_custom_call.1} parent=35 // pred_check
          %p246 = pneg %p236
        $region42: #{tpu_custom_call.1} parent=35 // pred_check_branch
          %248 = sbr.rel (%p246) target = $region44
        $region43: #{tpu_custom_call.1} parent=35 // pred_region
          %v249 = vlaneseq
          %v250 = vshrl.u32 %v249, 7
          %v251 = vld [vmem:[%s223] sm:$0x1]
          %v252 = vlaneseq
          %v253 = vshrl.u32 %v252, 7
          %v254 = vsub.s32 0, %v253
          %v255 = vrot.slane %v251, %v254
          %vm256 = vcmp.eq.s32.totalorder %v250, %v255
          %v257 = vsel %vm256, 1, 0
          %v258 = vcvt.s32.f32 %v257
          %v259 = vld [vmem:[%s234] sm:$0xff]
          %v260 = vld [vmem:[%s234 + $0x8] sm:$0xff]
          %v261 = vld [vmem:[#allocation2] sm:$0xff]
          %vm262 = vcmask 130048
          %v264 = vsel %vm262, %v258, 0
          %266 = vmatprep.subr.mxu0 0.0
          %267 = vmatpush1.msra.mxu0 %v259
          %268 = vmatprep.subr.mxu0 0.0
          %269 = vmatpush1.msra.mxu0 %v260
          %270 = vmatprep.subr.mxu0 0.0
          %271 = vmatpush1.msra.mxu0 0.0
          %272 = vmatprep.subr.mxu0 0.0
          %273 = vmatpush1.msra.mxu0 0.0
          %274 = vmatprep.subr.mxu0 0.0
          %275 = vmatpush1.msra.mxu0 0.0
          %276 = vmatprep.subr.mxu0 0.0
          %277 = vmatpush1.msra.mxu0 0.0
          %278 = vmatprep.subr.mxu0 0.0
          %279 = vmatpush1.msra.mxu0 0.0
          %280 = vmatprep.subr.mxu0 0.0
          %281 = vmatpush1.msra.mxu0 0.0
          %282 = vmatprep.subr.mxu0 0.0
          %283 = vmatpush1.msra.mxu0 0.0
          %284 = vmatprep.subr.mxu0 0.0
          %285 = vmatpush1.msra.mxu0 0.0
          %286 = vmatprep.subr.mxu0 0.0
          %287 = vmatpush1.msra.mxu0 0.0
          %288 = vmatprep.subr.mxu0 0.0
          %289 = vmatpush1.msra.mxu0 0.0
          %290 = vmatprep.subr.mxu0 0.0
          %291 = vmatpush1.msra.mxu0 0.0
          %292 = vmatprep.subr.mxu0 0.0
          %293 = vmatpush1.msra.mxu0 0.0
          %294 = vmatprep.subr.mxu0 0.0
          %295 = vmatpush1.msra.mxu0 0.0
          %296 = vmatprep.subr.mxu0 0.0
          %297 = vmatpush1.msra.mxu0 0.0
          %298 = vmatprep.subr.mxu0 0.0
          %299 = vmatpush1.msra.mxu0 0.0
          %300 = vmatprep.subr.mxu0 0.0
          %301 = vmatpush1.msra.mxu0 0.0
          %302 = vmatprep.subr.mxu0 0.0
          %303 = vmatpush1.msra.mxu0 0.0
          %304 = vmatprep.subr.mxu0 0.0
          %305 = vmatpush1.msra.mxu0 0.0
          %306 = vmatprep.subr.mxu0 0.0
          %307 = vmatpush1.msra.mxu0 0.0
          %308 = vmatprep.subr.mxu0 0.0
          %309 = vmatpush1.msra.mxu0 0.0
          %310 = vmatprep.subr.mxu0 0.0
          %311 = vmatpush1.msra.mxu0 0.0
          %312 = vmatprep.subr.mxu0 0.0
          %313 = vmatpush1.msra.mxu0 0.0
          %314 = vmatprep.subr.mxu0 0.0
          %315 = vmatpush1.msra.mxu0 0.0
          %316 = vmatprep.subr.mxu0 0.0
          %317 = vmatpush1.msra.mxu0 0.0
          %318 = vmatprep.subr.mxu0 0.0
          %319 = vmatpush1.msra.mxu0 0.0
          %320 = vmatprep.subr.mxu0 0.0
          %321 = vmatpush1.msra.mxu0 0.0
          %322 = vmatprep.subr.mxu0 0.0
          %323 = vmatpush1.msra.mxu0 0.0
          %324 = vmatprep.subr.mxu0 0.0
          %325 = vmatpush1.msra.mxu0 0.0
          %326 = vmatprep.subr.mxu0 0.0
          %327 = vmatpush1.msra.mxu0 0.0
          %328 = vmatprep.subr.mxu0 0.0
          %329 = vmatpush1.msra.mxu0 0.0
          %330 = vmatprep.mubr.f32.mxu0 0.0
          %331 = vmatmul.mubr.f32.gmra.mrb[0].mxu0 %v264
          %v332 = vpop.f32.mrb[0].mxu0
          %v333 = vadd.f32 0.0, %v332
          %v334 = vpop.f32.mrb[0].mxu0
          %335 = vdwg.mxu0
          %v336 = vadd.f32 %v261, %v333
          %vm337 = vcmask 261120
          %338 = vst.msk [vmem:[#allocation2] sm:$0xff] %vm337, %v336
        $region44: #{tpu_custom_call.1} parent=35 // pred_fallthru
          _
        // Predicated region
        $region45: #{tpu_custom_call.1} parent=35 // pred_check
          _
        $region46: #{tpu_custom_call.1} parent=35 // pred_check_branch
          %340 = sbr.rel (%p238) target = $region48
        $region47: #{tpu_custom_call.1} parent=35 // pred_region
          %v341 = vld [vmem:[#allocation2] sm:$0xff]
          %v342 = vld [vmem:[%s3] sm:$0xff]
          %344 = vset.pattern.permute.xlu0 0
          %345 = vperm.xlu0 %344, %v342
          %v346 = vpop.permute.xlu0 %345
          %v348 = vmul.f32 %v341, %v346
          %vm349 = vcmask 261120
          %350 = vst.msk [vmem:[#allocation2] sm:$0xff] %vm349, %v348
        $region48: #{tpu_custom_call.1} parent=35 // pred_fallthru
          _
        %p351 = scmp.eq.s32.totalorder %s22, 1
        // Predicated region
        $region49: #{tpu_custom_call.1} parent=35 // pred_check
          %p352 = pneg %p351
        $region50: #{tpu_custom_call.1} parent=35 // pred_check_branch
          %354 = sbr.rel (%p352) target = $region52
        $region51: #{tpu_custom_call.1} parent=35 // pred_region
          %v355 = vld [vmem:[%s234] sm:$0xff]
          %v356 = vld [vmem:[%s234 + $0x8] sm:$0xff]
          %v357 = vlaneseq
          %v358 = vand.u32 %v357, 127
          %v359 = vld [vmem:[%s228] sm:$0xff]
          %v360 = vld [vmem:[%s228 + $0x8] sm:$0xff]
          %361 = vset.pattern.permute.xlu0 0
          %362 = vperm.xlu0 %361, %v359
          %v363 = vpop.permute.xlu0 %362
          %364 = vset.pattern.permute.xlu0 0
          %365 = vperm.xlu0 %364, %v360
          %v366 = vpop.permute.xlu0 %365
          %vm367 = vcmp.eq.s32.totalorder %v358, %v363
          %vm368 = vcmp.eq.s32.totalorder %v358, %v366
          %v369 = vsel %vm367, 1, 0
          %v370 = vsel %vm368, 1, 0
          %v371 = vcvt.s32.f32 %v369
          %v372 = vcvt.s32.f32 %v370
          %v373 = vld [vmem:[#allocation2] sm:$0xff]
          %vm374 = vcmask 64512
          %v376 = vsel %vm374, %v371, 0
          %v379 = vsel %vm374, %v372, 0
          %381 = vmatprep.subr.mxu0 0.0
          %382 = vmatpush1.msra.mxu0 %v373
          %383 = vmatprep.subr.mxu0 0.0
          %384 = vmatpush1.msra.mxu0 0.0
          %385 = vmatprep.subr.mxu0 0.0
          %386 = vmatpush1.msra.mxu0 0.0
          %387 = vmatprep.subr.mxu0 0.0
          %388 = vmatpush1.msra.mxu0 0.0
          %389 = vmatprep.subr.mxu0 0.0
          %390 = vmatpush1.msra.mxu0 0.0
          %391 = vmatprep.subr.mxu0 0.0
          %392 = vmatpush1.msra.mxu0 0.0
          %393 = vmatprep.subr.mxu0 0.0
          %394 = vmatpush1.msra.mxu0 0.0
          %395 = vmatprep.subr.mxu0 0.0
          %396 = vmatpush1.msra.mxu0 0.0
          %397 = vmatprep.subr.mxu0 0.0
          %398 = vmatpush1.msra.mxu0 0.0
          %399 = vmatprep.subr.mxu0 0.0
          %400 = vmatpush1.msra.mxu0 0.0
          %401 = vmatprep.subr.mxu0 0.0
          %402 = vmatpush1.msra.mxu0 0.0
          %403 = vmatprep.subr.mxu0 0.0
          %404 = vmatpush1.msra.mxu0 0.0
          %405 = vmatprep.subr.mxu0 0.0
          %406 = vmatpush1.msra.mxu0 0.0
          %407 = vmatprep.subr.mxu0 0.0
          %408 = vmatpush1.msra.mxu0 0.0
          %409 = vmatprep.subr.mxu0 0.0
          %410 = vmatpush1.msra.mxu0 0.0
          %411 = vmatprep.subr.mxu0 0.0
          %412 = vmatpush1.msra.mxu0 0.0
          %413 = vmatprep.subr.mxu0 0.0
          %414 = vmatpush1.msra.mxu0 0.0
          %415 = vmatprep.subr.mxu0 0.0
          %416 = vmatpush1.msra.mxu0 0.0
          %417 = vmatprep.subr.mxu0 0.0
          %418 = vmatpush1.msra.mxu0 0.0
          %419 = vmatprep.subr.mxu0 0.0
          %420 = vmatpush1.msra.mxu0 0.0
          %421 = vmatprep.subr.mxu0 0.0
          %422 = vmatpush1.msra.mxu0 0.0
          %423 = vmatprep.subr.mxu0 0.0
          %424 = vmatpush1.msra.mxu0 0.0
          %425 = vmatprep.subr.mxu0 0.0
          %426 = vmatpush1.msra.mxu0 0.0
          %427 = vmatprep.subr.mxu0 0.0
          %428 = vmatpush1.msra.mxu0 0.0
          %429 = vmatprep.subr.mxu0 0.0
          %430 = vmatpush1.msra.mxu0 0.0
          %431 = vmatprep.subr.mxu0 0.0
          %432 = vmatpush1.msra.mxu0 0.0
          %433 = vmatprep.subr.mxu0 0.0
          %434 = vmatpush1.msra.mxu0 0.0
          %435 = vmatprep.subr.mxu0 0.0
          %436 = vmatpush1.msra.mxu0 0.0
          %437 = vmatprep.subr.mxu0 0.0
          %438 = vmatpush1.msra.mxu0 0.0
          %439 = vmatprep.subr.mxu0 0.0
          %440 = vmatpush1.msra.mxu0 0.0
          %441 = vmatprep.subr.mxu0 0.0
          %442 = vmatpush1.msra.mxu0 0.0
          %443 = vmatprep.subr.mxu0 0.0
          %444 = vmatpush1.msra.mxu0 0.0
          %445 = vmatprep.mubr.f32.mxu0 0.0
          %446 = vmatmul.mubr.f32.gmra.mrb[0].mxu0 %v376
          %v447 = vpop.f32.mrb[0].mxu0
          %v448 = vadd.f32 0.0, %v447
          %v449 = vpop.f32.mrb[0].mxu0
          %450 = vmatprep.mubr.f32.mxu0 0.0
          %451 = vmatmul.mubr.f32.gmra.mrb[0].mxu0 %v379
          %v452 = vpop.f32.mrb[0].mxu0
          %v453 = vadd.f32 0.0, %v452
          %v454 = vpop.f32.mrb[0].mxu0
          %455 = vdwg.mxu0
          %v456 = vsub.f32 %v355, %v448
          %v457 = vsub.f32 %v356, %v453
          %v458 = vmul.f32 %v456, %v456
          %v459 = vmul.f32 %v457, %v457
          %vm460 = vcmask 261120
          %v461 = vsel %vm460, %v458, 0.0
          %462 = vadd.xlane.f32.xlu0 %v461
          %v463 = vpop.xlane.xlu0 %462
          %v464 = vsel %vm460, %v459, 0.0
          %465 = vadd.xlane.f32.xlu0 %v464
          %v466 = vpop.xlane.xlu0 %465
          %v467 = vrsqrt.pop %v463
          %v468 = vmul.f32 %v463, %v467
          %vm469 = vcmp.eq.f32.partialorder %v463, inf
          %v470 = vsel %vm469, %v463, %v468
          %vm471 = vcmp.eq.f32.partialorder %v463, 0.0
          %v472 = vand.u32 %v463, 2147483648
          %v473 = vsel %vm471, %v472, %v470
          %v474 = vrsqrt.pop %v466
          %v475 = vmul.f32 %v466, %v474
          %vm476 = vcmp.eq.f32.partialorder %v466, inf
          %v477 = vsel %vm476, %v466, %v475
          %vm478 = vcmp.eq.f32.partialorder %v466, 0.0
          %v479 = vand.u32 %v466, 2147483648
          %v480 = vsel %vm478, %v479, %v477
          %v481 = vsub.f32 %v473, 0.5
          %v482 = vsub.f32 %v480, 0.5
          %v483 = vmax.f32 %v481, 0.0
          %v484 = vmax.f32 %v482, 0.0
          %v485 = vmul.f32 %v483, %v483
          %v486 = vmul.f32 %v484, %v484
          %v487 = vld [vmem:[#allocation3] sm:$0x1]
          %v488 = vmul.f32 %v371, %v485
          %v489 = vmul.f32 %v372, %v486
          %v490 = vsel %vm374, %v488, 0.0
          %v491 = vsel %vm374, %v489, 0.0
          %v492 = vadd.f32 %v490, %v491
          %v493 = vrot.slane %v492, 4
          %v494 = vadd.f32 %v492, %v493
          %v495 = vrot.slane %v494, 2
          %v496 = vadd.f32 %v494, %v495
          %v497 = vrot.slane %v496, 1
          %v498 = vadd.f32 %v496, %v497
          %v499 = vadd.f32 %v487, %v498
          %vm500 = vcmask 57344
          %501 = vst.msk [vmem:[#allocation3] sm:$0x1] %vm500, %v499
        $region52: #{tpu_custom_call.1} parent=35 // pred_fallthru
          _
        %p502 = pnand %p351, %p237
        %p503 = pneg %p502
        // Predicated region
        $region53: #{tpu_custom_call.1} parent=35 // pred_check
          _
        $region54: #{tpu_custom_call.1} parent=35 // pred_check_branch
          %505 = sbr.rel (%p502) target = $region56
        $region55: #{tpu_custom_call.1} parent=35 // pred_region
          %s506 = sld [smem:[#allocation5]]
          %s507 = scvt.s32.f32 %s506
          %v508 = vld [vmem:[%s3] sm:$0xff]
          %v509 = vld [vmem:[#allocation3] sm:$0x1]
          %510 = vxpose.xlu0.b32.start [1/16] %v508, 128
          %511 = vxpose.xlu0.b32.cont [2/16] 0.0, 128
          %512 = vxpose.xlu0.b32.cont [3/16] 0.0, 128
          %513 = vxpose.xlu0.b32.cont [4/16] 0.0, 128
          %514 = vxpose.xlu0.b32.cont [5/16] 0.0, 128
          %515 = vxpose.xlu0.b32.cont [6/16] 0.0, 128
          %516 = vxpose.xlu0.b32.cont [7/16] 0.0, 128
          %517 = vxpose.xlu0.b32.cont [8/16] 0.0, 128
          %518 = vxpose.xlu0.b32.cont [9/16] 0.0, 128
          %519 = vxpose.xlu0.b32.cont [10/16] 0.0, 128
          %520 = vxpose.xlu0.b32.cont [11/16] 0.0, 128
          %521 = vxpose.xlu0.b32.cont [12/16] 0.0, 128
          %522 = vxpose.xlu0.b32.cont [13/16] 0.0, 128
          %523 = vxpose.xlu0.b32.cont [14/16] 0.0, 128
          %524 = vxpose.xlu0.b32.cont [15/16] 0.0, 128
          %525 = vxpose.xlu0.b32.end [16/16] 0.0, 128
          %v526 = vpop.trf.xlu0
          %v527 = vpop.trf.xlu0
          %v528 = vpop.trf.xlu0
          %v529 = vpop.trf.xlu0
          %v530 = vpop.trf.xlu0
          %v531 = vpop.trf.xlu0
          %v532 = vpop.trf.xlu0
          %v533 = vpop.trf.xlu0
          %v534 = vpop.trf.xlu0
          %v535 = vpop.trf.xlu0
          %v536 = vpop.trf.xlu0
          %v537 = vpop.trf.xlu0
          %v538 = vpop.trf.xlu0
          %v539 = vpop.trf.xlu0
          %v540 = vpop.trf.xlu0
          %v541 = vpop.trf.xlu0
          %v542 = vmul.f32 %v509, %v526
          %vm543 = vcmask 57344
          %v544 = vsel %vm543, %v542, 0.0
          %545 = vadd.xlane.f32.xlu0 %v544
          %v546 = vpop.xlane.xlu0 %545
          %v547 = vrot.slane %v546, 4
          %v548 = vadd.f32 %v546, %v547
          %v549 = vrot.slane %v548, 2
          %v550 = vadd.f32 %v548, %v549
          %v551 = vrot.slane %v550, 1
          %v552 = vadd.f32 %v550, %v551
          %s553 = vtos %v552
          %v554 = vstv %s507
          %v555 = vrcp.pop %v554
          %s556 = vtos %v555
          %s557 = smul.f32 %s553, %s556
          %v558 = vld [vmem:[#allocation2] sm:$0xff]
          %v559 = vmul.f32 %v558, %v558
          %vm560 = vcmask 261120
          %v561 = vsel %vm560, %v559, 0.0
          %562 = vadd.xlane.f32.xlu0 %v561
          %v563 = vpop.xlane.xlu0 %562
          %v565 = vsel %vm560, %v558, 0
          %567 = vmatprep.subr.mxu0 0.0
          %568 = vmatpush1.xpose.msra.mxu0 %v565
          %569 = vmatprep.subr.mxu0 0.0
          %570 = vmatpush1.xpose.msra.mxu0 0.0
          %571 = vmatprep.subr.mxu0 0.0
          %572 = vmatpush1.xpose.msra.mxu0 0.0
          %573 = vmatprep.subr.mxu0 0.0
          %574 = vmatpush1.xpose.msra.mxu0 0.0
          %575 = vmatprep.subr.mxu0 0.0
          %576 = vmatpush1.xpose.msra.mxu0 0.0
          %577 = vmatprep.subr.mxu0 0.0
          %578 = vmatpush1.xpose.msra.mxu0 0.0
          %579 = vmatprep.subr.mxu0 0.0
          %580 = vmatpush1.xpose.msra.mxu0 0.0
          %581 = vmatprep.subr.mxu0 0.0
          %582 = vmatpush1.xpose.msra.mxu0 0.0
          %583 = vmatprep.subr.mxu0 0.0
          %584 = vmatpush1.xpose.msra.mxu0 0.0
          %585 = vmatprep.subr.mxu0 0.0
          %586 = vmatpush1.xpose.msra.mxu0 0.0
          %587 = vmatprep.subr.mxu0 0.0
          %588 = vmatpush1.xpose.msra.mxu0 0.0
          %589 = vmatprep.subr.mxu0 0.0
          %590 = vmatpush1.xpose.msra.mxu0 0.0
          %591 = vmatprep.subr.mxu0 0.0
          %592 = vmatpush1.xpose.msra.mxu0 0.0
          %593 = vmatprep.subr.mxu0 0.0
          %594 = vmatpush1.xpose.msra.mxu0 0.0
          %595 = vmatprep.subr.mxu0 0.0
          %596 = vmatpush1.xpose.msra.mxu0 0.0
          %597 = vmatprep.subr.mxu0 0.0
          %598 = vmatpush1.xpose.msra.mxu0 0.0
          %599 = vmatprep.subr.mxu0 0.0
          %600 = vmatpush1.xpose.msra.mxu0 0.0
          %601 = vmatprep.subr.mxu0 0.0
          %602 = vmatpush1.xpose.msra.mxu0 0.0
          %603 = vmatprep.subr.mxu0 0.0
          %604 = vmatpush1.xpose.msra.mxu0 0.0
          %605 = vmatprep.subr.mxu0 0.0
          %606 = vmatpush1.xpose.msra.mxu0 0.0
          %607 = vmatprep.subr.mxu0 0.0
          %608 = vmatpush1.xpose.msra.mxu0 0.0
          %609 = vmatprep.subr.mxu0 0.0
          %610 = vmatpush1.xpose.msra.mxu0 0.0
          %611 = vmatprep.subr.mxu0 0.0
          %612 = vmatpush1.xpose.msra.mxu0 0.0
          %613 = vmatprep.subr.mxu0 0.0
          %614 = vmatpush1.xpose.msra.mxu0 0.0
          %615 = vmatprep.subr.mxu0 0.0
          %616 = vmatpush1.xpose.msra.mxu0 0.0
          %617 = vmatprep.subr.mxu0 0.0
          %618 = vmatpush1.xpose.msra.mxu0 0.0
          %619 = vmatprep.subr.mxu0 0.0
          %620 = vmatpush1.xpose.msra.mxu0 0.0
          %621 = vmatprep.subr.mxu0 0.0
          %622 = vmatpush1.xpose.msra.mxu0 0.0
          %623 = vmatprep.subr.mxu0 0.0
          %624 = vmatpush1.xpose.msra.mxu0 0.0
          %625 = vmatprep.subr.mxu0 0.0
          %626 = vmatpush1.xpose.msra.mxu0 0.0
          %627 = vmatprep.subr.mxu0 0.0
          %628 = vmatpush1.xpose.msra.mxu0 0.0
          %629 = vmatprep.subr.mxu0 0.0
          %630 = vmatpush1.xpose.msra.mxu0 0.0
          %631 = vmatprep.mubr.f32.mxu0 0.0
          %632 = vmatmul.mubr.f32.gmra.mrb[0].mxu0 %v565
          %v633 = vpop.f32.mrb[0].mxu0
          %v634 = vadd.f32 0.0, %v633
          %v635 = vpop.f32.mrb[0].mxu0
          %636 = vdwg.mxu0
          %637 = vxpose.xlu0.b32.start [1/16] %v563, 128
          %638 = vxpose.xlu0.b32.cont [2/16] 0.0, 128
          %639 = vxpose.xlu0.b32.cont [3/16] 0.0, 128
          %640 = vxpose.xlu0.b32.cont [4/16] 0.0, 128
          %641 = vxpose.xlu0.b32.cont [5/16] 0.0, 128
          %642 = vxpose.xlu0.b32.cont [6/16] 0.0, 128
          %643 = vxpose.xlu0.b32.cont [7/16] 0.0, 128
          %644 = vxpose.xlu0.b32.cont [8/16] 0.0, 128
          %645 = vxpose.xlu0.b32.cont [9/16] 0.0, 128
          %646 = vxpose.xlu0.b32.cont [10/16] 0.0, 128
          %647 = vxpose.xlu0.b32.cont [11/16] 0.0, 128
          %648 = vxpose.xlu0.b32.cont [12/16] 0.0, 128
          %649 = vxpose.xlu0.b32.cont [13/16] 0.0, 128
          %650 = vxpose.xlu0.b32.cont [14/16] 0.0, 128
          %651 = vxpose.xlu0.b32.cont [15/16] 0.0, 128
          %652 = vxpose.xlu0.b32.end [16/16] 0.0, 128
          %v653 = vpop.trf.xlu0
          %v654 = vpop.trf.xlu0
          %v655 = vpop.trf.xlu0
          %v656 = vpop.trf.xlu0
          %v657 = vpop.trf.xlu0
          %v658 = vpop.trf.xlu0
          %v659 = vpop.trf.xlu0
          %v660 = vpop.trf.xlu0
          %v661 = vpop.trf.xlu0
          %v662 = vpop.trf.xlu0
          %v663 = vpop.trf.xlu0
          %v664 = vpop.trf.xlu0
          %v665 = vpop.trf.xlu0
          %v666 = vpop.trf.xlu0
          %v667 = vpop.trf.xlu0
          %v668 = vpop.trf.xlu0
          %v669 = vlaneseq
          %v670 = vshrl.u32 %v669, 7
          %v671 = vsub.s32 0, %v670
          %v672 = vrot.slane %v653, %v671
          %v673 = vadd.f32 %v563, %v672
          %v674 = vmul.f32 %v634, 2.0
          %v675 = vsub.f32 %v673, %v674
          %v676 = vmax.f32 %v675, 0.0
          %v677 = vrsqrt.pop %v676
          %v678 = vmul.f32 %v676, %v677
          %vm679 = vcmp.eq.f32.partialorder %v676, inf
          %v680 = vsel %vm679, %v676, %v678
          %vm681 = vcmp.eq.f32.partialorder %v676, 0.0
          %v682 = vand.u32 %v676, 2147483648
          %v683 = vsel %vm681, %v682, %v680
          %v684 = vsub.f32 10.0, %v683
          %v685 = vmax.f32 %v684, 0.0
          %v686 = vlaneseq
          %v687 = vshrl.u32 %v686, 7
          %v688 = vlaneseq
          %v689 = vand.u32 %v688, 127
          %v690 = vstv %s506
          %vm691 = vcmp.lt.s32.totalorder %v687, %v690
          %vm692 = vcmp.lt.s32.totalorder %v689, %v690
          %vm693 = vmand %vm691, %vm692
          %vm694 = vcmp.ne.s32.totalorder %v687, %v689
          %vm695 = vmand %vm693, %vm694
          %v696 = vsel %vm695, 1, 0
          %v697 = vcvt.s32.f32 %v696
          %s698 = ssub.f32 %s507, 1.0
          %s699 = smul.f32 %s507, %s698
          %s700 = smax.f32 %s699, 1.0
          %p701 = scmp.gt.s32.totalorder %s506, 1
          %v702 = vmul.f32 %v685, %v685
          %v703 = vmul.f32 %v702, %v697
          %vm704 = vcmask 64512
          %v705 = vsel %vm704, %v703, 0.0
          %706 = vadd.xlane.f32.xlu0 %v705
          %v707 = vpop.xlane.xlu0 %706
          %v708 = vrot.slane %v707, 4
          %v709 = vadd.f32 %v707, %v708
          %v710 = vrot.slane %v709, 2
          %v711 = vadd.f32 %v709, %v710
          %v712 = vrot.slane %v711, 1
          %v713 = vadd.f32 %v711, %v712
          %s714 = vtos %v713
          %v715 = vstv %s700
          %v716 = vrcp.pop %v715
          %s717 = vtos %v716
          %s718 = smul.f32 %s714, %s717
          %s719 = scalar_select %p701, %s718, 0.0
          %s720 = sadd.f32 %s557, %s719
          %s721 = scalar_lea.smem [#allocation6], 0
          %722 = sst [smem:[%s721]] %s720
        $region56: #{tpu_custom_call.1} parent=35 // pred_fallthru
          _
        // Predicated region
        $region57: #{tpu_custom_call.1} parent=35 // pred_check
          %p723 = pneg %p142
        $region58: #{tpu_custom_call.1} parent=35 // pred_check_branch
          %725 = sbr.rel (%p723) target = $region60
        $region59: #{tpu_custom_call.1} parent=35 // pred_region
          %s727 = ssub.s32 16, 16
          %728 = vsyncadd [#allocation7], %s727
          %731 = dma.smem_to_hbm [#allocation6], 16, %s5, [#allocation7]
        $region60: #{tpu_custom_call.1} parent=35 // pred_fallthru
          _
        // Predicated region
        $region61: #{tpu_custom_call.1} parent=35 // pred_check
          %p732 = pneg %p142
        $region62: #{tpu_custom_call.1} parent=35 // pred_check_branch
          %734 = sbr.rel (%p732) target = $region64
        $region63: #{tpu_custom_call.1} parent=35 // pred_region
          %735 = dma.done [#allocation7], 16
        $region64: #{tpu_custom_call.1} parent=35 // pred_fallthru
          _
        %736 = sfence
      $region36: #{tpu_custom_call.1} parent=5 // pred_fallthru
        _
      %p737 = scmp.le.s32.totalorder 2, %s13
      // Predicated region
      $region65: #{tpu_custom_call.1} parent=5 // pred_check
        %p738 = pneg %p737
      $region66: #{tpu_custom_call.1} parent=5 // pred_check_branch
        %740 = sbr.rel (%p738) target = $region68
      $region67: #{tpu_custom_call.1} parent=5 // pred_region
        %s741 = ssub.s32 %s13, 2
      $region68: #{tpu_custom_call.1} parent=5 // pred_fallthru
        _
    $region6: #{tpu_custom_call.1} parent=1 // loop_footer
      %s17 = sadd.s32 1, %s13
    $region7: #{tpu_custom_call.1} parent=1 // loop_footer_branch
      %12 = sbr.rel target = $region3
    $region8: #{tpu_custom_call.1} parent=1 // loop_exit
      _
    %742 = vsyncpa [#allocation7], 1
    %s743 = scalar_lea.sflag [#allocation7], 1
    %744 = vsyncpa %s743, 1

</llo_original>
